<compile_context>
chip_gen: v5e
topology: v5e:2x2
jax: 0.10.0
libtpu: 0.0.40
codegen_flags: <defaults>
</compile_context>

<pallas_src>
import functools
import math

import jax
import jax.numpy as jnp
from jax.experimental import pallas as pl
from jax.experimental.pallas import tpu as pltpu


def _round_up(x, m):
    return ((x + m - 1) // m) * m


# ---------------------------------------------------------------------------
# Kernels
# ---------------------------------------------------------------------------
def _kernel_single_k(*refs, has_bias):
    # grid = (B, nV, nL); blocks: W (tv, tu), X (1, tu, tl), [bias (tv, 1)],
    # Y (1, tv, tl).  Whole reduction in one MXU job, no accumulator scratch.
    if has_bias:
        w_ref, x_ref, b_ref, o_ref = refs
    else:
        w_ref, x_ref, o_ref = refs
        b_ref = None
    acc = jnp.dot(w_ref[...], x_ref[0], preferred_element_type=jnp.float32)
    if has_bias:
        acc = acc + b_ref[...]          # (tv, 1) broadcasts over (tv, tl), f32
    o_ref[0] = acc.astype(o_ref.dtype)


def _kernel_multi_k(*refs, has_bias):
    # grid = (B, nV, nL, nU) with the reduction axis (k) last / "arbitrary".
    if has_bias:
        w_ref, x_ref, b_ref, o_ref, acc_ref = refs
    else:
        w_ref, x_ref, o_ref, acc_ref = refs
        b_ref = None

    k = pl.program_id(3)
    prod = jnp.dot(w_ref[...], x_ref[0], preferred_element_type=jnp.float32)

    @pl.when(k == 0)
    def _():                     # direct store: no zero-init pass over VMEM
        acc_ref[...] = prod

    @pl.when(k != 0)
    def _():
        acc_ref[...] += prod

    @pl.when(k == pl.num_programs(3) - 1)
    def _():                     # fused bias epilogue, single output store
        res = acc_ref[...]
        if has_bias:
            res = res + b_ref[...]
        o_ref[0] = res.astype(o_ref.dtype)


# ---------------------------------------------------------------------------
# Wrapper
# ---------------------------------------------------------------------------
def transposed_linear(x, weight, bias=None, *, tv_cap=256, tl_cap=1024,
                      tu_cap=512, compute_dtype=None):
    """y = einsum('b u ..., v u -> b v ...', x, weight) + bias."""
    B, U = x.shape[0], x.shape[1]
    trailing = x.shape[2:]
    L = math.prod(trailing) if trailing else 1
    V, U_w = weight.shape
    assert U_w == U
    out_dtype = x.dtype

    x2 = x.reshape(B, U, L)
    w2 = weight
    if compute_dtype is not None:
        x2 = x2.astype(compute_dtype)
        w2 = w2.astype(compute_dtype)

    # --- tile selection ----------------------------------------------------
    # V and L are never padded: partial boundary blocks along non-reduction
    # dims only touch output elements that are never written back.
    tv = V if V <= tv_cap else max(8, (tv_cap // 8) * 8)
    tl = L if L <= tl_cap else max(128, (tl_cap // 128) * 128)

    # U (reduction) must be exact: either one full block, an aligned divisor,
    # or zero-padded up to a multiple of the tile.
    Up = U
    if U <= tu_cap:
        tu = U
    else:
        cap128 = max(128, (tu_cap // 128) * 128)
        tu = None
        for d in range(cap128, 0, -128):          # largest 128-multiple divisor
            if U % d == 0:
                tu = d
                break
        if tu is None:                            # no aligned divisor: pad U only
            tu = cap128
            Up = _round_up(U, tu)
            x2 = jnp.pad(x2, ((0, 0), (0, Up - U), (0, 0)))
            w2 = jnp.pad(w2, ((0, 0), (0, Up - U)))

    nV = pl.cdiv(V, tv)
    nL = pl.cdiv(L, tl)
    nU = Up // tu

    # v7x has 2 TensorCores per chip: make sure the parallel grid >= 2 programs.
    if B * nV * nL == 1:
        if L >= 256:
            tl = _round_up(pl.cdiv(L, 2), 128)
            nL = pl.cdiv(L, tl)
        elif V >= 16:
            tv = _round_up(pl.cdiv(V, 2), 8)
            nV = pl.cdiv(V, tv)

    has_bias = bias is not None
    multi_k = nU > 1

    # --- specs ---------------------------------------------------------------
    if multi_k:
        grid = (B, nV, nL, nU)
        w_spec = pl.BlockSpec((tv, tu), lambda b, i, j, k: (i, k))
        x_spec = pl.BlockSpec((1, tu, tl), lambda b, i, j, k: (b, k, j))
        b_spec = pl.BlockSpec((tv, 1), lambda b, i, j, k: (i, 0))
        o_spec = pl.BlockSpec((1, tv, tl), lambda b, i, j, k: (b, i, j))
        scratch = [pltpu.VMEM((tv, tl), jnp.float32)]
        semantics = ("parallel", "parallel", "parallel", "arbitrary")
        kernel = functools.partial(_kernel_multi_k, has_bias=has_bias)
    else:
        grid = (B, nV, nL)
        w_spec = pl.BlockSpec((tv, tu), lambda b, i, j: (i, 0))
        x_spec = pl.BlockSpec((1, tu, tl), lambda b, i, j: (b, 0, j))
        b_spec = pl.BlockSpec((tv, 1), lambda b, i, j: (i, 0))
        o_spec = pl.BlockSpec((1, tv, tl), lambda b, i, j: (b, i, j))
        scratch = []
        semantics = ("parallel", "parallel", "parallel")
        kernel = functools.partial(_kernel_single_k, has_bias=has_bias)

    in_specs = [w_spec, x_spec]
    inputs = [w2, x2]
    if has_bias:
        # Keep bias in f32: it is added against the f32 accumulator.
        inputs.append(bias.reshape(V, 1).astype(jnp.float32))
        in_specs.append(b_spec)

    # --- cost estimate & VMEM budget ----------------------------------------
    x_item = jnp.dtype(x2.dtype).itemsize
    w_item = jnp.dtype(w2.dtype).itemsize
    o_item = jnp.dtype(out_dtype).itemsize
    bytes_accessed = (
        B * Up * L * x_item * nV            # X re-streamed once per V tile
        + V * Up * w_item * B * nL          # W re-streamed once per (b, L tile)
        + B * V * L * o_item                # Y written once
        + (V * 4 * B * nL if has_bias else 0)
    )
    cost = pl.CostEstimate(flops=2 * B * V * U * L, transcendentals=0,
                           bytes_accessed=bytes_accessed)

    vmem_needed = (
        2 * (tv * tu * w_item + tu * tl * x_item + tv * tl * o_item)
        + (2 * tv * 4 if has_bias else 0)
        + (tv * tl * 4 if multi_k else 0)
    )
    vmem_limit = min(max(int(1.5 * vmem_needed) + (4 << 20), 32 << 20), 64 << 20)

    out = pl.pallas_call(
        kernel,
        out_shape=jax.ShapeDtypeStruct((B, V, L), out_dtype),
        grid_spec=pltpu.PrefetchScalarGridSpec(
            num_scalar_prefetch=0,
            grid=grid,
            in_specs=in_specs,
            out_specs=o_spec,
            scratch_shapes=scratch,
        ),
        compiler_params=pltpu.CompilerParams(
            dimension_semantics=semantics,
            vmem_limit_bytes=vmem_limit,
        ),
        cost_estimate=cost,
    )(*inputs)

    return out.reshape(B, V, *trailing)


def transposed_linear_ref(x, weight, bias=None):
    trailing = x.shape[2:]
    y = jnp.einsum("bu...,vu->bv...", x, weight,
                   precision=jax.lax.Precision.HIGHEST)
    if bias is not None:
        y = y + bias.reshape(-1, *([1] * len(trailing)))
    return y


if __name__ == "__main__":
    key = jax.random.PRNGKey(0)
    k1, k2, k3, k4, k5, k6, k7, k8 = jax.random.split(key, 8)

    # --- Test 1: module-like shape (B, D, H, W), bias, single-k fast path.
    B, d_in, d_out = 2, 32, 64
    spatial = (16, 16)
    x = jax.random.normal(k1, (B, d_in) + spatial, dtype=jnp.float32)
    bound = 1.0 / math.sqrt(d_in)      # kaiming_uniform_(a=sqrt(5)) bound
    w = jax.random.uniform(k2, (d_out, d_in), minval=-bound, maxval=bound,
                           dtype=jnp.float32)
    b = jax.random.uniform(k3, (d_out,), minval=-bound, maxval=bound,
                           dtype=jnp.float32)

    out = jax.block_until_ready(transposed_linear(x, w, b))
    ref = transposed_linear_ref(x, w, b)
    assert out.shape == (B, d_out) + spatial
    assert jnp.allclose(out, ref, atol=1e-3, rtol=1e-3), float(
        jnp.max(jnp.abs(out - ref)))

    # --- Test 2: bias=None -> biasless kernel variant (no zeros stream).
    out2 = jax.block_until_ready(transposed_linear(x, w, None))
    ref2 = transposed_linear_ref(x, w, None)
    assert jnp.allclose(out2, ref2, atol=1e-3, rtol=1e-3)

    # --- Test 3: multi-k reduction + partial (non-padded) V / L blocks.
    x3 = jax.random.normal(k4, (1, 384, 10, 13), dtype=jnp.float32)
    w3 = jax.random.normal(k5, (40, 384), dtype=jnp.float32) / math.sqrt(384)
    b3 = jax.random.normal(k6, (40,), dtype=jnp.float32)
    out3 = jax.block_until_ready(
        transposed_linear(x3, w3, b3, tv_cap=16, tl_cap=128, tu_cap=128))
    ref3 = transposed_linear_ref(x3, w3, b3)
    assert out3.shape == ref3.shape
    assert jnp.allclose(out3, ref3, atol=2e-2, rtol=2e-2), float(
        jnp.max(jnp.abs(out3 - ref3)))

    # --- Test 4: reduction dim with no aligned divisor (U=200 -> pad to 256).
    x4 = jax.random.normal(k7, (2, 200, 70), dtype=jnp.float32)
    w4 = jax.random.normal(k8, (24, 200), dtype=jnp.float32) / math.sqrt(200)
    out4 = jax.block_until_ready(transposed_linear(x4, w4, None, tu_cap=128))
    ref4 = transposed_linear_ref(x4, w4, None)
    assert out4.shape == ref4.shape
    assert jnp.allclose(out4, ref4, atol=2e-2, rtol=2e-2), float(
        jnp.max(jnp.abs(out4 - ref4)))

    print("KERNEL_OK")
</pallas_src>

<mosaic_0001>
module attributes {stable_mosaic.version = 11 : i64} {
  func.func @_kernel_single_k(%arg0: i32, %arg1: i32, %arg2: i32, %arg3: memref<64x32xf32, #tpu.memory_space<vmem>>, %arg4: memref<1x32x256xf32, #tpu.memory_space<vmem>>, %arg5: memref<64x1xf32, #tpu.memory_space<vmem>>, %arg6: memref<1x64x256xf32, #tpu.memory_space<vmem>>) attributes {dimension_semantics = [#tpu.dimension_semantics<parallel>, #tpu.dimension_semantics<parallel>, #tpu.dimension_semantics<parallel>], iteration_bounds = array<i64: 2, 1, 1>, scalar_prefetch = 0 : i64, scratch_operands = 0 : i64, tpu.core_type = #tpu.core_type<tc>, window_params = [{transform_indices = @transform_0, window_bounds = array<i64: 64, 32>}, {transform_indices = @transform_1, window_bounds = array<i64: 1, 32, 256>}, {transform_indices = @transform_2, window_bounds = array<i64: 64, 1>}, {transform_indices = @transform_3, window_bounds = array<i64: 1, 64, 256>}]} {
    %c0 = arith.constant 0 : index
    %c0_0 = arith.constant 0 : index
    %0 = vector.load %arg3[%c0, %c0_0] : memref<64x32xf32, #tpu.memory_space<vmem>>, vector<64x32xf32>
    %c0_1 = arith.constant 0 : index
    %c0_2 = arith.constant 0 : index
    %c0_3 = arith.constant 0 : index
    %1 = vector.load %arg4[%c0_1, %c0_2, %c0_3] : memref<1x32x256xf32, #tpu.memory_space<vmem>>, vector<1x32x256xf32>
    %2 = vector.shape_cast %1 : vector<1x32x256xf32> to vector<32x256xf32>
    %cst = arith.constant dense<0.000000e+00> : vector<64x256xf32>
    %3 = tpu.matmul %0, %2, %cst {dimension_numbers = #tpu.dot_dimension_numbers<[1], [0], [0], [1], [0, 0, 1, 1], [], []>} : vector<64x32xf32>, vector<32x256xf32>, vector<64x256xf32> -> vector<64x256xf32>
    %c0_4 = arith.constant 0 : index
    %c0_5 = arith.constant 0 : index
    %4 = vector.load %arg5[%c0_4, %c0_5] : memref<64x1xf32, #tpu.memory_space<vmem>>, vector<64x1xf32>
    %5 = vector.broadcast %4 : vector<64x1xf32> to vector<64x256xf32>
    %6 = arith.addf %3, %5 : vector<64x256xf32>
    %c0_6 = arith.constant 0 : index
    %c0_7 = arith.constant 0 : index
    %c0_8 = arith.constant 0 : index
    %7 = vector.load %arg6[%c0_6, %c0_7, %c0_8] : memref<1x64x256xf32, #tpu.memory_space<vmem>>, vector<1x64x256xf32>
    %8 = vector.shape_cast %7 : vector<1x64x256xf32> to vector<64x256xf32>
    %9 = vector.shape_cast %6 : vector<64x256xf32> to vector<1x64x256xf32>
    tpu.vector_store %arg6[%c0_6, %c0_7, %c0_8], %9 {strides = array<i32>} : memref<1x64x256xf32, #tpu.memory_space<vmem>>, vector<1x64x256xf32>,
    return
  }
  func.func @transform_0(%arg0: i32, %arg1: i32, %arg2: i32) -> (i32, i32) {
    %c0_i32 = arith.constant 0 : i32
    %c0_i32_0 = arith.constant 0 : i32
    return %arg1, %c0_i32 : i32, i32
  }
  func.func @transform_1(%arg0: i32, %arg1: i32, %arg2: i32) -> (i32, i32, i32) {
    %c0_i32 = arith.constant 0 : i32
    %c0_i32_0 = arith.constant 0 : i32
    return %arg0, %c0_i32, %arg2 : i32, i32, i32
  }
  func.func @transform_2(%arg0: i32, %arg1: i32, %arg2: i32) -> (i32, i32) {
    %c0_i32 = arith.constant 0 : i32
    %c0_i32_0 = arith.constant 0 : i32
    return %arg1, %c0_i32 : i32, i32
  }
  func.func @transform_3(%arg0: i32, %arg1: i32, %arg2: i32) -> (i32, i32, i32) {
    %c0_i32 = arith.constant 0 : i32
    return %arg0, %arg1, %arg2 : i32, i32, i32
  }
}

</mosaic_0001>

<llo_original>
// kernel: tpu_custom_call.1
$region0: #{tpu_custom_call.1}
  #allocation0 [shape = 'u32[]', space=smem, size = 0x4, offset = 0x4, fixed_abs, tag = 'smem constant byte address 0x4 - core index']
  #allocation1 [shape = 'u32[72,128]{1,0:T(1,128)}', space=vmem, size = 0x9000, scoped, tag = 'internal scratch']
  %s0 = inlined_call_operand.vmem [shape: f32[64,32], index: 0, kind: input, shape index: {}]
  %s1 = inlined_call_operand.vmem [shape: f32[2,32,256], index: 1, kind: input, shape index: {}]
  %s2 = inlined_call_operand.vmem [shape: f32[64,1], index: 2, kind: input, shape index: {}]
  %s3 = inlined_call_operand.hbm [shape: f32[2,64,256], index: 3, kind: output, shape index: {}]
  %s4 = sld [smem:[#allocation0]]
  $region45: #{tpu_custom_call.1} parent=0
    _
  %s6 = ssub.s32 1, %s4
  %s7 = scalar_select 0, %s6, %s4
  $region1: #{tpu_custom_call.1} parent=0
    #allocation2 [shape = 'u8[131072]{0}', space=vmem, size = 0x20000, scoped, tag = 'output window, operand 0']
    #allocation3 [shape = 's32[2]{0}', space=sflag, size = 0x8, scoped, tag = 'scoped memory for tpu_custom_call.1']
    %8 = vsyncpa [#allocation3], 0
    %s9 = scalar_lea.sflag [#allocation3], 1
    %10 = vsyncpa %s9, 0
    loop: start=0, step=1, limit=4
    $region2: #{tpu_custom_call.1} parent=1 // loop_pre_header
      _
    $region3: #{tpu_custom_call.1} parent=1 // loop_header
      %s12 = sphi 0, %s16
      %p13 = scmp.ge.s32.totalorder %s12, 4
      %s19 = sphi 0, %s38
      %s20 = sphi 0, %s34
      %s21 = sphi 0, %s30
      %s22 = sphi 0, %s19
      %s23 = sphi 0, %s20
      %s24 = sphi 0, %s21
      %s25 = sphi 0, %s22
      %s26 = sphi 0, %s23
      %s27 = sphi 0, %s24
      %s41 = sphi 0, %s43
      %s44 = sphi 0, %s41
      %s45 = sphi 0, %s44
      %s61 = sphi 0, %s45
      %s69 = sphi 0, %s71
      %s72 = sphi 0, %s69
      %s73 = sphi 0, %s72
      %s89 = sphi 0, %s73
      %s95 = sphi 0, %s97
      %s98 = sphi 0, %s95
      %s99 = sphi 0, %s98
      %s115 = sphi 0, %s99
      %s125 = sphi 0, %s127
      %s128 = sphi 0, %s125
      %s129 = sphi 0, %s128
      %s145 = sphi 0, %s129
    $region4: #{tpu_custom_call.1} parent=1 // loop_header_branch
      %15 = sbr.rel (%p13) target = $region8
    $region5: #{tpu_custom_call.1} parent=1 // loop_body
      %s17 = ssub.s32 %s12, 1
      %s18 = ssub.s32 %s12, 2
      %s28 = sadd.s32 1, %s21
      %p29 = scmp.ge.s32.totalorder %s28, 1
      %s30 = scalar_select %p29, 0, %s28
      %s31 = sadd.s32 1, %s20
      %s32 = scalar_select %p29, %s31, %s20
      %p33 = scmp.ge.s32.totalorder %s32, 1
      %s34 = scalar_select %p33, 0, %s32
      %s35 = sadd.s32 1, %s19
      %s36 = scalar_select %p33, %s35, %s19
      %p37 = scmp.ge.s32.totalorder %s36, 2
      %s38 = scalar_select %p37, 0, %s36
      %s39 = ssub.s32 %s20, %s34
      %p40 = scmp.eq.s32.totalorder %s39, 0
      %s42 = sadd.s32 %s41, 1
      %s43 = scalar_select %p40, %s41, %s42
      %p46 = pneg %p40
      %p47 = scmp.eq.s32.totalorder %s12, 1
      %p48 = por %p46, %p47
      %p49 = scmp.ne.s32.totalorder %s41, %s44
      %p50 = scmp.eq.s32.totalorder %s12, 0
      %p51 = por %p49, %p50
      %p52 = scmp.ne.s32.totalorder %s41, %s44
      %p53 = scmp.eq.s32.totalorder %s17, 1
      %p54 = por %p52, %p53
      %p55 = scmp.ne.s32.totalorder %s44, %s45
      %p56 = scmp.eq.s32.totalorder %s17, 0
      %p57 = por %p55, %p56
      %p58 = scmp.ne.s32.totalorder %s44, %s45
      %p59 = scmp.eq.s32.totalorder %s18, 1
      %p60 = por %p58, %p59
      %p62 = scmp.ne.s32.totalorder %s45, %s61
      %p63 = scmp.eq.s32.totalorder %s18, 0
      %p64 = por %p62, %p63
      %s65 = ssub.s32 %s19, %s38
      %s66 = ssub.s32 %s21, %s30
      %s67 = sor.u32 %s65, %s66
      %p68 = scmp.eq.s32.totalorder %s67, 0
      %s70 = sadd.s32 %s69, 1
      %s71 = scalar_select %p68, %s69, %s70
      %p74 = pneg %p68
      %p75 = scmp.eq.s32.totalorder %s12, 1
      %p76 = por %p74, %p75
      %p77 = scmp.ne.s32.totalorder %s69, %s72
      %p78 = scmp.eq.s32.totalorder %s12, 0
      %p79 = por %p77, %p78
      %p80 = scmp.ne.s32.totalorder %s69, %s72
      %p81 = scmp.eq.s32.totalorder %s17, 1
      %p82 = por %p80, %p81
      %p83 = scmp.ne.s32.totalorder %s72, %s73
      %p84 = scmp.eq.s32.totalorder %s17, 0
      %p85 = por %p83, %p84
      %p86 = scmp.ne.s32.totalorder %s72, %s73
      %p87 = scmp.eq.s32.totalorder %s18, 1
      %p88 = por %p86, %p87
      %p90 = scmp.ne.s32.totalorder %s73, %s89
      %p91 = scmp.eq.s32.totalorder %s18, 0
      %p92 = por %p90, %p91
      %s93 = ssub.s32 %s20, %s34
      %p94 = scmp.eq.s32.totalorder %s93, 0
      %s96 = sadd.s32 %s95, 1
      %s97 = scalar_select %p94, %s95, %s96
      %p100 = pneg %p94
      %p101 = scmp.eq.s32.totalorder %s12, 1
      %p102 = por %p100, %p101
      %p103 = scmp.ne.s32.totalorder %s95, %s98
      %p104 = scmp.eq.s32.totalorder %s12, 0
      %p105 = por %p103, %p104
      %p106 = scmp.ne.s32.totalorder %s95, %s98
      %p107 = scmp.eq.s32.totalorder %s17, 1
      %p108 = por %p106, %p107
      %p109 = scmp.ne.s32.totalorder %s98, %s99
      %p110 = scmp.eq.s32.totalorder %s17, 0
      %p111 = por %p109, %p110
      %p112 = scmp.ne.s32.totalorder %s98, %s99
      %p113 = scmp.eq.s32.totalorder %s18, 1
      %p114 = por %p112, %p113
      %p116 = scmp.ne.s32.totalorder %s99, %s115
      %p117 = scmp.eq.s32.totalorder %s18, 0
      %p118 = por %p116, %p117
      %s119 = ssub.s32 %s19, %s38
      %s120 = ssub.s32 %s20, %s34
      %s121 = sor.u32 %s119, %s120
      %s122 = ssub.s32 %s21, %s30
      %s123 = sor.u32 %s121, %s122
      %p124 = scmp.eq.s32.totalorder %s123, 0
      %s126 = sadd.s32 %s125, 1
      %s127 = scalar_select %p124, %s125, %s126
      %p130 = pneg %p124
      %p131 = scmp.eq.s32.totalorder %s12, 1
      %p132 = por %p130, %p131
      %p133 = scmp.ne.s32.totalorder %s125, %s128
      %p134 = scmp.eq.s32.totalorder %s12, 0
      %p135 = por %p133, %p134
      %p136 = scmp.ne.s32.totalorder %s125, %s128
      %p137 = scmp.eq.s32.totalorder %s17, 1
      %p138 = por %p136, %p137
      %p139 = scmp.ne.s32.totalorder %s128, %s129
      %p140 = scmp.eq.s32.totalorder %s17, 0
      %p141 = por %p139, %p140
      %p142 = scmp.ne.s32.totalorder %s128, %s129
      %p143 = scmp.eq.s32.totalorder %s18, 1
      %p144 = por %p142, %p143
      %p146 = scmp.ne.s32.totalorder %s129, %s145
      %p147 = scmp.eq.s32.totalorder %s18, 0
      %p148 = por %p146, %p147
      %p149 = scmp.le.s32.totalorder 1, %s12
      %p150 = scmp.lt.s32.totalorder %s12, 3
      %p151 = pnand %p149, %p150
      %p152 = pneg %p151
      // Predicated region
      $region9: #{tpu_custom_call.1} parent=5 // pred_check
        _
      $region10: #{tpu_custom_call.1} parent=5 // pred_check_branch
        %154 = sbr.rel (%p151) target = $region12
      $region11: #{tpu_custom_call.1} parent=5 // pred_region
        %s155 = ssub.s32 %s12, 1
        // Predicated region
        $region13: #{tpu_custom_call.1} parent=11 // pred_check
          %p156 = pneg %p57
        $region14: #{tpu_custom_call.1} parent=11 // pred_check_branch
          %158 = sbr.rel (%p156) target = $region16
        $region15: #{tpu_custom_call.1} parent=11 // pred_region
          %s159 = smul.u32 8, %s23
          %p160 = scmp.lt.s32.totalorder %s159, 7
          %s161 = scalar_select %p160, %s159, 7
          %s162 = smul.addr %s161, 8
          %s163 = scalar_lea.vmem %s0, %s162
          %s164 = smul.u32 8, %s23
        $region16: #{tpu_custom_call.1} parent=11 // pred_fallthru
          _
        // Predicated region
        $region17: #{tpu_custom_call.1} parent=11 // pred_check
          %p165 = pneg %p111
        $region18: #{tpu_custom_call.1} parent=11 // pred_check_branch
          %167 = sbr.rel (%p165) target = $region20
        $region19: #{tpu_custom_call.1} parent=11 // pred_region
          %s168 = smul.u32 8, %s23
          %p169 = scmp.lt.s32.totalorder %s168, 7
          %s170 = scalar_select %p169, %s168, 7
          %s171 = smul.addr %s170, 8
          %s172 = scalar_lea.vmem %s2, %s171
          %s173 = smul.u32 8, %s23
        $region20: #{tpu_custom_call.1} parent=11 // pred_fallthru
          _
      $region12: #{tpu_custom_call.1} parent=5 // pred_fallthru
        _
      %p174 = scmp.lt.s32.totalorder %s12, 2
      // Predicated region
      $region21: #{tpu_custom_call.1} parent=5 // pred_check
        %p175 = pneg %p174
      $region22: #{tpu_custom_call.1} parent=5 // pred_check_branch
        %177 = sbr.rel (%p175) target = $region24
      $region23: #{tpu_custom_call.1} parent=5 // pred_region
        // Predicated region
        $region25: #{tpu_custom_call.1} parent=23 // pred_check
          %p178 = pneg %p79
        $region26: #{tpu_custom_call.1} parent=23 // pred_check_branch
          %180 = sbr.rel (%p178) target = $region28
        $region27: #{tpu_custom_call.1} parent=23 // pred_region
          %s181 = smul.u32 2, %s21
          %p182 = scmp.lt.s32.totalorder %s19, 1
          %s183 = scalar_select %p182, %s19, 1
          %p184 = scmp.lt.s32.totalorder %s181, 1
          %s185 = scalar_select %p184, %s181, 1
          %s186 = smul.addr %s183, 8
          %s187 = sadd.s32 %s185, %s186
          %s188 = smul.addr %s187, 8
          %s189 = scalar_lea.vmem %s1, %s188
          %s190 = smul.u32 2, %s21
        $region28: #{tpu_custom_call.1} parent=23 // pred_fallthru
          _
      $region24: #{tpu_custom_call.1} parent=5 // pred_fallthru
        _
      %p191 = scmp.le.s32.totalorder 1, %s12
      %p192 = scmp.lt.s32.totalorder %s12, 3
      %p193 = pnand %p191, %p192
      %p194 = pneg %p193
      // Predicated region
      $region29: #{tpu_custom_call.1} parent=5 // pred_check
        _
      $region30: #{tpu_custom_call.1} parent=5 // pred_check_branch
        %196 = sbr.rel (%p193) target = $region32
      $region31: #{tpu_custom_call.1} parent=5 // pred_region
        %s197 = ssub.s32 %s12, 1
        %s198 = smul.u32 8, %s23
        %p199 = scmp.lt.s32.totalorder %s198, 7
        %s200 = scalar_select %p199, %s198, 7
        %s201 = smul.addr %s200, 8
        %s202 = scalar_lea.vmem %s0, %s201
        %p203 = pneg %p57
        %p204 = pneg %p54
        %s205 = smul.u32 2, %s24
        %p206 = scmp.lt.s32.totalorder %s22, 1
        %s207 = scalar_select %p206, %s22, 1
        %p208 = scmp.lt.s32.totalorder %s205, 1
        %s209 = scalar_select %p208, %s205, 1
        %s210 = smul.addr %s207, 8
        %s211 = sadd.s32 %s209, %s210
        %s212 = smul.addr %s211, 8
        %s213 = scalar_lea.vmem %s1, %s212
        %p214 = pneg %p85
        %p215 = pneg %p82
        %s216 = smul.u32 8, %s23
        %p217 = scmp.lt.s32.totalorder %s216, 7
        %s218 = scalar_select %p217, %s216, 7
        %s219 = smul.addr %s218, 8
        %s220 = scalar_lea.vmem %s2, %s219
        %p221 = pneg %p111
        %p222 = pneg %p108
        %p223 = pneg %p141
        %p224 = pneg %p138
        %s225 = sand.u32 %s128, 1
        %s226 = scalar_lea.sflag [#allocation3], %s225
        %s227 = sand.u32 %s128, 1
        %s228 = smul.addr %s227, 128
        %s229 = scalar_lea.vmem [#allocation2], %s228
        %s230 = smul.u32 8, %s23
        %p231 = scmp.lt.s32.totalorder %s230, 7
        %s232 = scalar_select %p231, %s230, 7
        %s233 = smul.addr %s232, 8
        %s234 = scalar_lea.vmem %s0, %s233
        %s235 = smul.u32 8, %s23
        %s236 = smul.u32 2, %s24
        %p237 = scmp.lt.s32.totalorder %s22, 1
        %s238 = scalar_select %p237, %s22, 1
        %p239 = scmp.lt.s32.totalorder %s236, 1
        %s240 = scalar_select %p239, %s236, 1
        %s241 = smul.addr %s238, 8
        %s242 = sadd.s32 %s240, %s241
        %s243 = smul.addr %s242, 8
        %s244 = scalar_lea.vmem %s1, %s243
        %s245 = smul.u32 2, %s24
        %s246 = smul.u32 8, %s23
        %p247 = scmp.lt.s32.totalorder %s246, 7
        %s248 = scalar_select %p247, %s246, 7
        %s249 = smul.addr %s248, 8
        %s250 = scalar_lea.vmem %s2, %s249
        %s251 = smul.u32 8, %s23
        %s252 = smul.u32 8, %s23
        %s253 = smul.u32 2, %s24
        %v254 = vld [vmem:[%s234] sm:$0xff]
        %v255 = vld [vmem:[%s234 + $0x8] sm:$0xff]
        %v256 = vld [vmem:[%s234 + $0x10] sm:$0xff]
        %v257 = vld [vmem:[%s234 + $0x18] sm:$0xff]
        %v258 = vld [vmem:[%s234 + $0x20] sm:$0xff]
        %v259 = vld [vmem:[%s234 + $0x28] sm:$0xff]
        %v260 = vld [vmem:[%s234 + $0x30] sm:$0xff]
        %v261 = vld [vmem:[%s234 + $0x38] sm:$0xff]
        %v262 = vld [vmem:[%s244] sm:$0xff]
        %v263 = vld [vmem:[%s244 + $0x8] sm:$0xff]
        %v264 = vld [vmem:[%s244 + $0x10] sm:$0xff]
        %v265 = vld [vmem:[%s244 + $0x18] sm:$0xff]
        %v266 = vld [vmem:[%s244 + $0x20] sm:$0xff]
        %v267 = vld [vmem:[%s244 + $0x28] sm:$0xff]
        %v268 = vld [vmem:[%s244 + $0x30] sm:$0xff]
        %v269 = vld [vmem:[%s244 + $0x38] sm:$0xff]
        %v270 = vld [vmem:[%s250] sm:$0xff]
        %v271 = vld [vmem:[%s250 + $0x8] sm:$0xff]
        %v272 = vld [vmem:[%s250 + $0x10] sm:$0xff]
        %v273 = vld [vmem:[%s250 + $0x18] sm:$0xff]
        %v274 = vld [vmem:[%s250 + $0x20] sm:$0xff]
        %v275 = vld [vmem:[%s250 + $0x28] sm:$0xff]
        %v276 = vld [vmem:[%s250 + $0x30] sm:$0xff]
        %v277 = vld [vmem:[%s250 + $0x38] sm:$0xff]
        %279 = vset.pattern.permute.xlu0 0
        %280 = vperm.xlu0 %279, %v270
        %v281 = vpop.permute.xlu0 %280
        %284 = vset.pattern.permute.xlu0 0
        %285 = vperm.xlu0 %284, %v271
        %v286 = vpop.permute.xlu0 %285
        %289 = vset.pattern.permute.xlu0 0
        %290 = vperm.xlu0 %289, %v272
        %v291 = vpop.permute.xlu0 %290
        %294 = vset.pattern.permute.xlu0 0
        %295 = vperm.xlu0 %294, %v273
        %v296 = vpop.permute.xlu0 %295
        %299 = vset.pattern.permute.xlu0 0
        %300 = vperm.xlu0 %299, %v274
        %v301 = vpop.permute.xlu0 %300
        %304 = vset.pattern.permute.xlu0 0
        %305 = vperm.xlu0 %304, %v275
        %v306 = vpop.permute.xlu0 %305
        %309 = vset.pattern.permute.xlu0 0
        %310 = vperm.xlu0 %309, %v276
        %v311 = vpop.permute.xlu0 %310
        %314 = vset.pattern.permute.xlu0 0
        %315 = vperm.xlu0 %314, %v277
        %v316 = vpop.permute.xlu0 %315
        %vm318 = vcmask 261120
        %v320 = vsel %vm318, %v254, 0
        %v323 = vsel %vm318, %v255, 0
        %v326 = vsel %vm318, %v256, 0
        %v329 = vsel %vm318, %v257, 0
        %v332 = vsel %vm318, %v258, 0
        %v335 = vsel %vm318, %v259, 0
        %v338 = vsel %vm318, %v260, 0
        %v341 = vsel %vm318, %v261, 0
        %343 = vmatpush.msra.mxu0 0.0
        %344 = vmatpush.msra.mxu0 0.0
        %345 = vmatpush.msra.mxu0 0.0
        %346 = vmatpush.msra.mxu0 0.0
        %347 = vmatpush.msra.mxu0 0.0
        %348 = vmatpush.msra.mxu0 0.0
        %349 = vmatpush.msra.mxu0 0.0
        %350 = vmatpush.msra.mxu0 0.0
        %351 = vmatpush.msra.mxu0 0.0
        %352 = vmatpush.msra.mxu0 0.0
        %353 = vmatpush.msra.mxu0 0.0
        %354 = vmatpush.msra.mxu0 0.0
        %355 = vmatpush.msra.mxu0 %v268
        %356 = vmatpush.msra.mxu0 %v266
        %357 = vmatpush.msra.mxu0 %v264
        %358 = vmatpush.msra.mxu0 %v262
        %359 = vmatmul.f32.gmra.mxu0 %v320
        %v360 = vpop.f32.mrf.mxu0
        %v361 = vadd.f32 %v281, %v360
        %362 = vmatmul.f32.gmra.mxu0 %v323
        %v363 = vpop.f32.mrf.mxu0
        %v364 = vadd.f32 %v286, %v363
        %365 = vmatmul.f32.gmra.mxu0 %v326
        %v366 = vpop.f32.mrf.mxu0
        %v367 = vadd.f32 %v291, %v366
        %368 = vmatmul.f32.gmra.mxu0 %v329
        %v369 = vpop.f32.mrf.mxu0
        %v370 = vadd.f32 %v296, %v369
        %371 = vmatmul.f32.gmra.mxu0 %v332
        %v372 = vpop.f32.mrf.mxu0
        %v373 = vadd.f32 %v301, %v372
        %374 = vmatmul.f32.gmra.mxu0 %v335
        %v375 = vpop.f32.mrf.mxu0
        %v376 = vadd.f32 %v306, %v375
        %377 = vmatmul.f32.gmra.mxu0 %v338
        %v378 = vpop.f32.mrf.mxu0
        %v379 = vadd.f32 %v311, %v378
        %380 = vmatmul.f32.gmra.mxu0 %v341
        %v381 = vpop.f32.mrf.mxu0
        %v382 = vadd.f32 %v316, %v381
        %383 = vdwg.mxu0
        %384 = vmatpush.msra.mxu0 0.0
        %385 = vmatpush.msra.mxu0 0.0
        %386 = vmatpush.msra.mxu0 0.0
        %387 = vmatpush.msra.mxu0 0.0
        %388 = vmatpush.msra.mxu0 0.0
        %389 = vmatpush.msra.mxu0 0.0
        %390 = vmatpush.msra.mxu0 0.0
        %391 = vmatpush.msra.mxu0 0.0
        %392 = vmatpush.msra.mxu0 0.0
        %393 = vmatpush.msra.mxu0 0.0
        %394 = vmatpush.msra.mxu0 0.0
        %395 = vmatpush.msra.mxu0 0.0
        %396 = vmatpush.msra.mxu0 %v269
        %397 = vmatpush.msra.mxu0 %v267
        %398 = vmatpush.msra.mxu0 %v265
        %399 = vmatpush.msra.mxu0 %v263
        %400 = vmatmul.f32.gmra.mxu0 %v320
        %v401 = vpop.f32.mrf.mxu0
        %v402 = vadd.f32 %v281, %v401
        %403 = vmatmul.f32.gmra.mxu0 %v323
        %v404 = vpop.f32.mrf.mxu0
        %v405 = vadd.f32 %v286, %v404
        %406 = vmatmul.f32.gmra.mxu0 %v326
        %v407 = vpop.f32.mrf.mxu0
        %v408 = vadd.f32 %v291, %v407
        %409 = vmatmul.f32.gmra.mxu0 %v329
        %v410 = vpop.f32.mrf.mxu0
        %v411 = vadd.f32 %v296, %v410
        %412 = vmatmul.f32.gmra.mxu0 %v332
        %v413 = vpop.f32.mrf.mxu0
        %v414 = vadd.f32 %v301, %v413
        %415 = vmatmul.f32.gmra.mxu0 %v335
        %v416 = vpop.f32.mrf.mxu0
        %v417 = vadd.f32 %v306, %v416
        %418 = vmatmul.f32.gmra.mxu0 %v338
        %v419 = vpop.f32.mrf.mxu0
        %v420 = vadd.f32 %v311, %v419
        %421 = vmatmul.f32.gmra.mxu0 %v341
        %v422 = vpop.f32.mrf.mxu0
        %v423 = vadd.f32 %v316, %v422
        %424 = vdwg.mxu0
        %425 = vst [vmem:[%s229] sm:$0xff] %v361
        %426 = vst [vmem:[%s229 + $0x8] sm:$0xff] %v402
        %427 = vst [vmem:[%s229 + $0x10] sm:$0xff] %v364
        %428 = vst [vmem:[%s229 + $0x18] sm:$0xff] %v405
        %429 = vst [vmem:[%s229 + $0x20] sm:$0xff] %v367
        %430 = vst [vmem:[%s229 + $0x28] sm:$0xff] %v408
        %431 = vst [vmem:[%s229 + $0x30] sm:$0xff] %v370
        %432 = vst [vmem:[%s229 + $0x38] sm:$0xff] %v411
        %433 = vst [vmem:[%s229 + $0x40] sm:$0xff] %v373
        %434 = vst [vmem:[%s229 + $0x48] sm:$0xff] %v414
        %435 = vst [vmem:[%s229 + $0x50] sm:$0xff] %v376
        %436 = vst [vmem:[%s229 + $0x58] sm:$0xff] %v417
        %437 = vst [vmem:[%s229 + $0x60] sm:$0xff] %v379
        %438 = vst [vmem:[%s229 + $0x68] sm:$0xff] %v420
        %439 = vst [vmem:[%s229 + $0x70] sm:$0xff] %v382
        %440 = vst [vmem:[%s229 + $0x78] sm:$0xff] %v423
        %s441 = sand.u32 %s128, 1
        %s442 = scalar_lea.sflag [#allocation3], %s441
        %s443 = sand.u32 %s128, 1
        %s444 = smul.addr %s443, 128
        %s445 = scalar_lea.vmem [#allocation2], %s444
        // Predicated region
        $region33: #{tpu_custom_call.1} parent=31 // pred_check
          %p446 = pneg %p138
        $region34: #{tpu_custom_call.1} parent=31 // pred_check_branch
          %448 = sbr.rel (%p446) target = $region36
        $region35: #{tpu_custom_call.1} parent=31 // pred_region
          %s449 = smul.u32 8, %s23
          %s450 = smul.u32 2, %s24
          %452 = vsyncadd %s442, 0
          %s453 = smul.addr %s449, 2
          %s454 = sadd.s32 %s450, %s453
          %s455 = smul.addr %s22, 16
          %s456 = sadd.s32 %s454, %s455
          %s457 = smul.addr %s456, 8
          %s458 = scalar_lea.hbm %s3, %s457
          %s459 = sshll.u32 %s445, 4
          %s460 = int_to_ptr.vmem [resolvable:$true] %s459
          %s461 = sshll.u32 %s458, 4
          %s462 = int_to_ptr.hbm [resolvable:$true] %s461
          %467 = dma.vmem_to_hbm [thread:$0]  %s460, 2048, %s462, %s442, 256, 256, 16
        $region36: #{tpu_custom_call.1} parent=31 // pred_fallthru
          _
      $region32: #{tpu_custom_call.1} parent=5 // pred_fallthru
        _
      %p468 = scmp.le.s32.totalorder 2, %s12
      // Predicated region
      $region37: #{tpu_custom_call.1} parent=5 // pred_check
        %p469 = pneg %p468
      $region38: #{tpu_custom_call.1} parent=5 // pred_check_branch
        %471 = sbr.rel (%p469) target = $region40
      $region39: #{tpu_custom_call.1} parent=5 // pred_region
        %s472 = ssub.s32 %s12, 2
        // Predicated region
        $region41: #{tpu_custom_call.1} parent=39 // pred_check
          %p473 = pneg %p144
        $region42: #{tpu_custom_call.1} parent=39 // pred_check_branch
          %475 = sbr.rel (%p473) target = $region44
        $region43: #{tpu_custom_call.1} parent=39 // pred_region
          %s476 = sand.u32 %s129, 1
          %s477 = scalar_lea.sflag [#allocation3], %s476
          %s478 = sand.u32 %s129, 1
          %s479 = smul.addr %s478, 128
          %s480 = scalar_lea.vmem [#allocation2], %s479
          %482 = dma.done %s477, 2048
        $region44: #{tpu_custom_call.1} parent=39 // pred_fallthru
          _
      $region40: #{tpu_custom_call.1} parent=5 // pred_fallthru
        _
    $region6: #{tpu_custom_call.1} parent=1 // loop_footer
      %s16 = sadd.s32 1, %s12
    $region7: #{tpu_custom_call.1} parent=1 // loop_footer_branch
      %11 = sbr.rel target = $region3
    $region8: #{tpu_custom_call.1} parent=1 // loop_exit
      _
    %483 = vsyncpa [#allocation3], 1
    %s484 = scalar_lea.sflag [#allocation3], 1
    %485 = vsyncpa %s484, 1

</llo_original>
